<compile_context>
chip_gen: v7x
topology: tpu7x:2x2x1
jax: 0.10.0
libtpu: 0.0.40
codegen_flags: <defaults>
</compile_context>

<pallas_src>
import jax
import jax.numpy as jnp
from jax.experimental import pallas as pl
from jax.experimental.pallas import tpu as pltpu


# -----------------------------------------------------------------------------
# Tiling helpers
# -----------------------------------------------------------------------------

# Budget for the streaming slabs per grid step (x block + y block, each
# double-buffered by the Pallas pipeline).  Conservative so blocks tuned here
# are also safe under v7x's 64 MiB physical / 32 MiB default-scoped VMEM.
_SLAB_BUDGET_BYTES = 8 << 20


def _choose_block_rows(n_rows, row_bytes):
    """Batches per grid step.

    - as many rows as the slab budget allows (amortize per-step overhead),
    - block second-minor dim either == n_rows or a multiple of 8
      (Pallas (8, 128) block-shape rule),
    - keep >= 2 grid steps when there are enough rows so both v7x TensorCores
      get work on the "parallel" batch axis.
    """
    max_rows = max(1, _SLAB_BUDGET_BYTES // (4 * max(int(row_bytes), 1)))
    if n_rows >= 16:
        max_rows = min(max_rows, n_rows // 2)
    if n_rows <= max_rows:
        return n_rows
    return max(8, (max_rows // 8) * 8)


def _vmem_limit_bytes(*pallas_buffer_bytes):
    """Explicit scoped-VMEM limit: double-buffered Pallas blocks plus margin
    for in-kernel f32 temporaries; stays well below v7x's 64 MiB physical."""
    need = 2 * sum(int(b) for b in pallas_buffer_bytes)
    return int(min(max(need + (8 << 20), 16 << 20), 48 << 20))


def _selectors(seq_len, n_feat):
    """Constant matrices implementing the strided per-channel reduction and
    broadcast on the folded (B, T*C) layout via the MXU.

      sel [t*C + c, c'] = (c == c')   ->  x2 @ sel   sums over t per channel
      selT[c', t*C + c] = (c == c')   ->  s @ selT   broadcasts (B,C)->(B,T*C)
    """
    eye = jnp.eye(n_feat, dtype=jnp.float32)
    sel = jnp.tile(eye, (seq_len, 1))    # (T*C, C)
    selT = jnp.tile(eye, (1, seq_len))   # (C, T*C)
    return sel, selT


# -----------------------------------------------------------------------------
# Kernels
# -----------------------------------------------------------------------------

def _revin_norm_kernel(eps, affine, seq_len):
    inv_t = 1.0 / float(seq_len)

    def kernel(x_ref, sel_ref, selT_ref, w_ref, b_ref, y_ref, mean_ref, std_ref):
        # Lane-dense slab; explicit f32 upcast (single cast, all math in f32).
        x = x_ref[...].astype(jnp.float32)                         # (bb, T*C)
        sel = sel_ref[...]                                         # (T*C, C)

        # Single pass over x: per-(batch, channel) sum and sum-of-squares via MXU.
        s1 = jnp.dot(x, sel, preferred_element_type=jnp.float32)       # (bb, C)
        s2 = jnp.dot(x * x, sel, preferred_element_type=jnp.float32)   # (bb, C)
        mean = s1 * inv_t
        # biased variance (matches torch.var(..., unbiased=False)); clamp for safety.
        var = jnp.maximum(s2 * inv_t - mean * mean, 0.0)
        inv_std = jax.lax.rsqrt(var + eps)                         # tiny (bb, C)
        std = (var + eps) * inv_std                                # == sqrt(var + eps)

        if affine:
            scale = inv_std * w_ref[...]                           # (bb, C)
            shift = b_ref[...] - mean * scale
        else:
            scale = inv_std
            shift = -mean * inv_std

        # Broadcast (bb, C) -> (bb, T*C) on the MXU; the big slab only sees FMAs.
        selT = selT_ref[...]
        scale_b = jnp.dot(scale, selT, preferred_element_type=jnp.float32)
        shift_b = jnp.dot(shift, selT, preferred_element_type=jnp.float32)

        y_ref[...] = (x * scale_b + shift_b).astype(y_ref.dtype)
        mean_ref[...] = mean.astype(mean_ref.dtype)
        std_ref[...] = std.astype(std_ref.dtype)

    return kernel


def _revin_denorm_kernel(eps, affine):
    def kernel(x_ref, selT_ref, w_ref, b_ref, mean_ref, std_ref, y_ref):
        x = x_ref[...].astype(jnp.float32)                         # (bb, T*C)
        mean = mean_ref[...].astype(jnp.float32)                   # (bb, C)
        std = std_ref[...].astype(jnp.float32)                     # (bb, C)

        if affine:
            inv_w = 1.0 / (w_ref[...] + eps * eps)                 # (1, C): tiny divide
            scale = std * inv_w                                    # (bb, C)
            shift = mean - b_ref[...] * scale
        else:
            scale = std
            shift = mean

        selT = selT_ref[...]
        scale_b = jnp.dot(scale, selT, preferred_element_type=jnp.float32)
        shift_b = jnp.dot(shift, selT, preferred_element_type=jnp.float32)
        y_ref[...] = (x * scale_b + shift_b).astype(y_ref.dtype)

    return kernel


# -----------------------------------------------------------------------------
# Wrappers
# -----------------------------------------------------------------------------

def revin_norm(x, weight, bias, *, eps=1e-5, affine=True):
    """RevIN 'norm' (subtract_last=False, mask=None).

    x: (B, T, C). Returns (y, mean, stdev); mean/stdev have shape (B, 1, C)
    and are float32 (statistics accumulate in f32 regardless of x.dtype).
    """
    B, T, C = x.shape
    TC = T * C
    itemsize = jnp.dtype(x.dtype).itemsize

    x2 = x.reshape(B, TC)                     # free reshape -> lane dim = T*C
    sel, selT = _selectors(T, C)
    w2 = jnp.asarray(weight, jnp.float32).reshape(1, C)
    b2 = jnp.asarray(bias, jnp.float32).reshape(1, C)

    bb = _choose_block_rows(B, TC * itemsize)
    grid = (pl.cdiv(B, bb),)

    grid_spec = pltpu.PrefetchScalarGridSpec(
        num_scalar_prefetch=0,
        grid=grid,
        in_specs=[
            pl.BlockSpec((bb, TC), lambda i: (i, 0)),   # x (streamed, lane-dense)
            pl.BlockSpec((TC, C), lambda i: (0, 0)),    # sel (resident)
            pl.BlockSpec((C, TC), lambda i: (0, 0)),    # selT (resident)
            pl.BlockSpec((1, C), lambda i: (0, 0)),     # affine weight
            pl.BlockSpec((1, C), lambda i: (0, 0)),     # affine bias
        ],
        out_specs=[
            pl.BlockSpec((bb, TC), lambda i: (i, 0)),   # y (streamed, lane-dense)
            pl.BlockSpec((bb, C), lambda i: (i, 0)),    # mean
            pl.BlockSpec((bb, C), lambda i: (i, 0)),    # stdev
        ],
    )
    vmem_limit = _vmem_limit_bytes(
        2 * bb * TC * itemsize,     # x + y blocks
        3 * bb * TC * 4,            # in-kernel f32 temporaries
        2 * TC * C * 4,             # sel + selT
    )
    y2, mean, std = pl.pallas_call(
        _revin_norm_kernel(float(eps), bool(affine), T),
        out_shape=(
            jax.ShapeDtypeStruct((B, TC), x.dtype),
            jax.ShapeDtypeStruct((B, C), jnp.float32),
            jax.ShapeDtypeStruct((B, C), jnp.float32),
        ),
        grid_spec=grid_spec,
        compiler_params=pltpu.CompilerParams(
            dimension_semantics=("parallel",),
            vmem_limit_bytes=vmem_limit,
        ),
    )(x2, sel, selT, w2, b2)
    return y2.reshape(B, T, C), mean.reshape(B, 1, C), std.reshape(B, 1, C)


def revin_denorm(x, weight, bias, mean, stdev, *, eps=1e-5, affine=True,
                 inplace=False):
    """RevIN 'denorm'. x: (B, T, C); mean/stdev: (B, 1, C) (or (B, C)).

    inplace=True aliases the output onto x's buffer (input_output_aliases),
    saving one HBM allocation when the caller no longer needs x.
    """
    B, T, C = x.shape
    TC = T * C
    itemsize = jnp.dtype(x.dtype).itemsize

    x2 = x.reshape(B, TC)
    _, selT = _selectors(T, C)
    w2 = jnp.asarray(weight, jnp.float32).reshape(1, C)
    b2 = jnp.asarray(bias, jnp.float32).reshape(1, C)
    mean2 = jnp.asarray(mean, jnp.float32).reshape(B, C)
    std2 = jnp.asarray(stdev, jnp.float32).reshape(B, C)

    bb = _choose_block_rows(B, TC * itemsize)
    grid = (pl.cdiv(B, bb),)

    grid_spec = pltpu.PrefetchScalarGridSpec(
        num_scalar_prefetch=0,
        grid=grid,
        in_specs=[
            pl.BlockSpec((bb, TC), lambda i: (i, 0)),   # x (streamed)
            pl.BlockSpec((C, TC), lambda i: (0, 0)),    # selT (resident)
            pl.BlockSpec((1, C), lambda i: (0, 0)),     # affine weight
            pl.BlockSpec((1, C), lambda i: (0, 0)),     # affine bias
            pl.BlockSpec((bb, C), lambda i: (i, 0)),    # mean
            pl.BlockSpec((bb, C), lambda i: (i, 0)),    # stdev
        ],
        out_specs=pl.BlockSpec((bb, TC), lambda i: (i, 0)),
    )
    vmem_limit = _vmem_limit_bytes(
        2 * bb * TC * itemsize, 3 * bb * TC * 4, C * TC * 4)
    y2 = pl.pallas_call(
        _revin_denorm_kernel(float(eps), bool(affine)),
        out_shape=jax.ShapeDtypeStruct((B, TC), x.dtype),
        grid_spec=grid_spec,
        compiler_params=pltpu.CompilerParams(
            dimension_semantics=("parallel",),
            vmem_limit_bytes=vmem_limit,
        ),
        input_output_aliases={0: 0} if inplace else {},
    )(x2, selT, w2, b2, mean2, std2)
    return y2.reshape(B, T, C)


# -----------------------------------------------------------------------------
# Demo / self-check
# -----------------------------------------------------------------------------

if __name__ == "__main__":
    B, T, C = 2, 8, 4          # batch, seq_len, num_features (enc_in)
    eps = 1e-5
    affine = True

    key = jax.random.PRNGKey(0)
    x = jax.random.normal(key, (B, T, C), dtype=jnp.float32) * 3.0 + 1.5
    weight = jnp.ones((C,), dtype=jnp.float32)   # affine_weight (init: ones)
    bias = jnp.zeros((C,), dtype=jnp.float32)    # affine_bias  (init: zeros)

    # mode='norm'
    y, mean, stdev = revin_norm(x, weight, bias, eps=eps, affine=affine)
    jax.block_until_ready((y, mean, stdev))

    # Pure-JAX reference of the 'norm' path (checked before denorm, since the
    # in-place denorm donates y's folded buffer).
    ref_mean = jnp.mean(x, axis=1, keepdims=True)
    ref_std = jnp.sqrt(jnp.var(x, axis=1, keepdims=True) + eps)
    ref_y = (x - ref_mean) / ref_std * weight + bias
    assert jnp.allclose(y, ref_y, atol=1e-4, rtol=1e-4), "norm mismatch"
    assert jnp.allclose(mean, ref_mean, atol=1e-4, rtol=1e-4), "mean mismatch"
    assert jnp.allclose(stdev, ref_std, atol=1e-4, rtol=1e-4), "stdev mismatch"

    # mode='denorm' (in-place: output aliases the normalized input's buffer)
    x_rec = revin_denorm(y, weight, bias, mean, stdev, eps=eps, affine=affine,
                         inplace=True)
    jax.block_until_ready(x_rec)
    # weight=1, bias=0 -> near-exact reconstruction of x
    assert jnp.allclose(x_rec, x, atol=1e-3, rtol=1e-3), "denorm mismatch"

    print("KERNEL_OK")
</pallas_src>

<mosaic_0001>
module attributes {stable_mosaic.version = 11 : i64} {
  func.func @kernel(%arg0: i32, %arg1: memref<2x32xf32, #tpu.memory_space<vmem>>, %arg2: memref<32x4xf32, #tpu.memory_space<vmem>>, %arg3: memref<4x32xf32, #tpu.memory_space<vmem>>, %arg4: memref<1x4xf32, #tpu.memory_space<vmem>>, %arg5: memref<1x4xf32, #tpu.memory_space<vmem>>, %arg6: memref<2x32xf32, #tpu.memory_space<vmem>>, %arg7: memref<2x4xf32, #tpu.memory_space<vmem>>, %arg8: memref<2x4xf32, #tpu.memory_space<vmem>>) attributes {dimension_semantics = [#tpu.dimension_semantics<parallel>], iteration_bounds = array<i64: 1>, scalar_prefetch = 0 : i64, scratch_operands = 0 : i64, tpu.core_type = #tpu.core_type<tc>, window_params = [{transform_indices = @transform_0, window_bounds = array<i64: 2, 32>}, {pipeline_mode = #tpu.pipeline_mode<synchronous>, transform_indices = @transform_1, window_bounds = array<i64: 32, 4>}, {pipeline_mode = #tpu.pipeline_mode<synchronous>, transform_indices = @transform_2, window_bounds = array<i64: 4, 32>}, {pipeline_mode = #tpu.pipeline_mode<synchronous>, transform_indices = @transform_3, window_bounds = array<i64: 1, 4>}, {pipeline_mode = #tpu.pipeline_mode<synchronous>, transform_indices = @transform_4, window_bounds = array<i64: 1, 4>}, {transform_indices = @transform_5, window_bounds = array<i64: 2, 32>}, {transform_indices = @transform_6, window_bounds = array<i64: 2, 4>}, {transform_indices = @transform_7, window_bounds = array<i64: 2, 4>}]} {
    %c0 = arith.constant 0 : index
    %c0_0 = arith.constant 0 : index
    %0 = vector.load %arg1[%c0, %c0_0] : memref<2x32xf32, #tpu.memory_space<vmem>>, vector<2x32xf32>
    %c0_1 = arith.constant 0 : index
    %c0_2 = arith.constant 0 : index
    %1 = vector.load %arg2[%c0_1, %c0_2] : memref<32x4xf32, #tpu.memory_space<vmem>>, vector<32x4xf32>
    %cst = arith.constant dense<0.000000e+00> : vector<2x4xf32>
    %2 = tpu.matmul %0, %1, %cst {dimension_numbers = #tpu.dot_dimension_numbers<[1], [0], [0], [1], [0, 0, 1, 1], [], []>} : vector<2x32xf32>, vector<32x4xf32>, vector<2x4xf32> -> vector<2x4xf32>
    %3 = arith.mulf %0, %0 : vector<2x32xf32>
    %cst_3 = arith.constant dense<0.000000e+00> : vector<2x4xf32>
    %4 = tpu.matmul %3, %1, %cst_3 {dimension_numbers = #tpu.dot_dimension_numbers<[1], [0], [0], [1], [0, 0, 1, 1], [], []>} : vector<2x32xf32>, vector<32x4xf32>, vector<2x4xf32> -> vector<2x4xf32>
    %cst_4 = arith.constant 1.250000e-01 : f32
    %5 = vector.broadcast %cst_4 : f32 to vector<2x4xf32>
    %6 = arith.mulf %2, %5 : vector<2x4xf32>
    %cst_5 = arith.constant 1.250000e-01 : f32
    %7 = vector.broadcast %cst_5 : f32 to vector<2x4xf32>
    %8 = arith.mulf %4, %7 : vector<2x4xf32>
    %9 = arith.mulf %6, %6 : vector<2x4xf32>
    %10 = arith.subf %8, %9 : vector<2x4xf32>
    %cst_6 = arith.constant 0.000000e+00 : f32
    %11 = vector.broadcast %cst_6 : f32 to vector<2x4xf32>
    %12 = arith.maximumf %10, %11 : vector<2x4xf32>
    %cst_7 = arith.constant 9.99999974E-6 : f32
    %13 = vector.broadcast %cst_7 : f32 to vector<2x4xf32>
    %14 = arith.addf %12, %13 : vector<2x4xf32>
    %15 = math.rsqrt %14 : vector<2x4xf32>
    %cst_8 = arith.constant 9.99999974E-6 : f32
    %16 = vector.broadcast %cst_8 : f32 to vector<2x4xf32>
    %17 = arith.addf %12, %16 : vector<2x4xf32>
    %18 = arith.mulf %17, %15 : vector<2x4xf32>
    %c0_9 = arith.constant 0 : index
    %c0_10 = arith.constant 0 : index
    %19 = vector.load %arg4[%c0_9, %c0_10] : memref<1x4xf32, #tpu.memory_space<vmem>>, vector<1x4xf32>
    %20 = vector.broadcast %19 : vector<1x4xf32> to vector<2x4xf32>
    %21 = arith.mulf %15, %20 : vector<2x4xf32>
    %c0_11 = arith.constant 0 : index
    %c0_12 = arith.constant 0 : index
    %22 = vector.load %arg5[%c0_11, %c0_12] : memref<1x4xf32, #tpu.memory_space<vmem>>, vector<1x4xf32>
    %23 = arith.mulf %6, %21 : vector<2x4xf32>
    %24 = vector.broadcast %22 : vector<1x4xf32> to vector<2x4xf32>
    %25 = arith.subf %24, %23 : vector<2x4xf32>
    %c0_13 = arith.constant 0 : index
    %c0_14 = arith.constant 0 : index
    %26 = vector.load %arg3[%c0_13, %c0_14] : memref<4x32xf32, #tpu.memory_space<vmem>>, vector<4x32xf32>
    %cst_15 = arith.constant dense<0.000000e+00> : vector<2x32xf32>
    %27 = tpu.matmul %21, %26, %cst_15 {dimension_numbers = #tpu.dot_dimension_numbers<[1], [0], [0], [1], [0, 0, 1, 1], [], []>} : vector<2x4xf32>, vector<4x32xf32>, vector<2x32xf32> -> vector<2x32xf32>
    %cst_16 = arith.constant dense<0.000000e+00> : vector<2x32xf32>
    %28 = tpu.matmul %25, %26, %cst_16 {dimension_numbers = #tpu.dot_dimension_numbers<[1], [0], [0], [1], [0, 0, 1, 1], [], []>} : vector<2x4xf32>, vector<4x32xf32>, vector<2x32xf32> -> vector<2x32xf32>
    %29 = arith.mulf %0, %27 : vector<2x32xf32>
    %30 = arith.addf %29, %28 : vector<2x32xf32>
    %c0_17 = arith.constant 0 : index
    %c0_18 = arith.constant 0 : index
    %31 = vector.load %arg6[%c0_17, %c0_18] : memref<2x32xf32, #tpu.memory_space<vmem>>, vector<2x32xf32>
    tpu.vector_store %arg6[%c0_17, %c0_18], %30 {strides = array<i32>} : memref<2x32xf32, #tpu.memory_space<vmem>>, vector<2x32xf32>,
    %c0_19 = arith.constant 0 : index
    %c0_20 = arith.constant 0 : index
    %32 = vector.load %arg7[%c0_19, %c0_20] : memref<2x4xf32, #tpu.memory_space<vmem>>, vector<2x4xf32>
    tpu.vector_store %arg7[%c0_19, %c0_20], %6 {strides = array<i32>} : memref<2x4xf32, #tpu.memory_space<vmem>>, vector<2x4xf32>,
    %c0_21 = arith.constant 0 : index
    %c0_22 = arith.constant 0 : index
    %33 = vector.load %arg8[%c0_21, %c0_22] : memref<2x4xf32, #tpu.memory_space<vmem>>, vector<2x4xf32>
    tpu.vector_store %arg8[%c0_21, %c0_22], %18 {strides = array<i32>} : memref<2x4xf32, #tpu.memory_space<vmem>>, vector<2x4xf32>,
    return
  }
  func.func @transform_0(%arg0: i32) -> (i32, i32) {
    %c0_i32 = arith.constant 0 : i32
    %c0_i32_0 = arith.constant 0 : i32
    return %arg0, %c0_i32 : i32, i32
  }
  func.func @transform_1(%arg0: i32) -> (i32, i32) {
    %c0_i32 = arith.constant 0 : i32
    %c0_i32_0 = arith.constant 0 : i32
    %c0_i32_1 = arith.constant 0 : i32
    return %c0_i32, %c0_i32_0 : i32, i32
  }
  func.func @transform_2(%arg0: i32) -> (i32, i32) {
    %c0_i32 = arith.constant 0 : i32
    %c0_i32_0 = arith.constant 0 : i32
    %c0_i32_1 = arith.constant 0 : i32
    return %c0_i32, %c0_i32_0 : i32, i32
  }
  func.func @transform_3(%arg0: i32) -> (i32, i32) {
    %c0_i32 = arith.constant 0 : i32
    %c0_i32_0 = arith.constant 0 : i32
    %c0_i32_1 = arith.constant 0 : i32
    return %c0_i32, %c0_i32_0 : i32, i32
  }
  func.func @transform_4(%arg0: i32) -> (i32, i32) {
    %c0_i32 = arith.constant 0 : i32
    %c0_i32_0 = arith.constant 0 : i32
    %c0_i32_1 = arith.constant 0 : i32
    return %c0_i32, %c0_i32_0 : i32, i32
  }
  func.func @transform_5(%arg0: i32) -> (i32, i32) {
    %c0_i32 = arith.constant 0 : i32
    %c0_i32_0 = arith.constant 0 : i32
    return %arg0, %c0_i32 : i32, i32
  }
  func.func @transform_6(%arg0: i32) -> (i32, i32) {
    %c0_i32 = arith.constant 0 : i32
    %c0_i32_0 = arith.constant 0 : i32
    return %arg0, %c0_i32 : i32, i32
  }
  func.func @transform_7(%arg0: i32) -> (i32, i32) {
    %c0_i32 = arith.constant 0 : i32
    %c0_i32_0 = arith.constant 0 : i32
    return %arg0, %c0_i32 : i32, i32
  }
}

</mosaic_0001>

<llo_original>
// kernel: tpu_custom_call.1
$region0: #{tpu_custom_call.1}
  #allocation0 [shape = 'u32[]', space=smem, size = 0x4, offset = 0x4, fixed_abs, tag = 'smem constant byte address 0x4 - core index']
  #allocation1 [shape = 'u32[144,128]{1,0:T(1,128)}', space=vmem, size = 0x12000, scoped, tag = 'internal scratch']
  %s0 = inlined_call_operand.vmem [shape: f32[2,32], index: 0, kind: input, shape index: {}]
  %s1 = inlined_call_operand.vmem [shape: f32[32,4], index: 1, kind: input, shape index: {}]
  %s2 = inlined_call_operand.vmem [shape: f32[4,32], index: 2, kind: input, shape index: {}]
  %s3 = inlined_call_operand.vmem [shape: f32[1,4], index: 3, kind: input, shape index: {}]
  %s4 = inlined_call_operand.vmem [shape: f32[1,4], index: 4, kind: input, shape index: {}]
  %s5 = inlined_call_operand.hbm [shape: f32[2,32], index: 5, kind: output, shape index: {0}]
  %s6 = inlined_call_operand.hbm [shape: f32[2,4], index: 6, kind: output, shape index: {1}]
  %s7 = inlined_call_operand.hbm [shape: f32[2,4], index: 7, kind: output, shape index: {2}]
  %8 = xla_tuple %s5, %s6, %s7
  %s9 = sld [smem:[#allocation0]]
  $region46: #{tpu_custom_call.1} parent=0
    _
  %s11 = ssub.s32 1, %s9
  %s12 = scalar_select 0, %s11, %s9
  $region1: #{tpu_custom_call.1} parent=0
    #allocation2 [shape = 'u8[1024]{0}', space=vmem, size = 0x400, scoped, tag = 'output window, operand 0, single buffered']
    #allocation3 [shape = 's32[1]{0}', space=sflag, size = 0x4, scoped, tag = 'scoped memory for tpu_custom_call.1']
    #allocation4 [shape = 'u8[1024]{0}', space=vmem, size = 0x400, scoped, tag = 'output window, operand 1, single buffered']
    #allocation5 [shape = 's32[1]{0}', space=sflag, size = 0x4, scoped, tag = 'scoped memory for tpu_custom_call.1']
    #allocation6 [shape = 'u8[1024]{0}', space=vmem, size = 0x400, scoped, tag = 'output window, operand 2, single buffered']
    %13 = vsyncpa [#allocation3], 0
    %14 = vsyncpa [#allocation5], 0
    // Predicated region
    $region2: #{tpu_custom_call.1} parent=1 // pred_check
      _
    $region3: #{tpu_custom_call.1} parent=1 // pred_check_branch
      %16 = sbr.rel (0) target = $region5
    $region4: #{tpu_custom_call.1} parent=1 // pred_region
      _
    $region5: #{tpu_custom_call.1} parent=1 // pred_fallthru
      _
    // Predicated region
    $region6: #{tpu_custom_call.1} parent=1 // pred_check
      _
    $region7: #{tpu_custom_call.1} parent=1 // pred_check_branch
      %18 = sbr.rel (0) target = $region9
    $region8: #{tpu_custom_call.1} parent=1 // pred_region
      _
    $region9: #{tpu_custom_call.1} parent=1 // pred_fallthru
      _
    // Predicated region
    $region10: #{tpu_custom_call.1} parent=1 // pred_check
      _
    $region11: #{tpu_custom_call.1} parent=1 // pred_check_branch
      %20 = sbr.rel (0) target = $region13
    $region12: #{tpu_custom_call.1} parent=1 // pred_region
      _
    $region13: #{tpu_custom_call.1} parent=1 // pred_fallthru
      _
    // Predicated region
    $region14: #{tpu_custom_call.1} parent=1 // pred_check
      _
    $region15: #{tpu_custom_call.1} parent=1 // pred_check_branch
      %22 = sbr.rel (0) target = $region17
    $region16: #{tpu_custom_call.1} parent=1 // pred_region
      _
    $region17: #{tpu_custom_call.1} parent=1 // pred_fallthru
      _
    // Predicated region
    $region18: #{tpu_custom_call.1} parent=1 // pred_check
      _
    $region19: #{tpu_custom_call.1} parent=1 // pred_check_branch
      %24 = sbr.rel (0) target = $region21
    $region20: #{tpu_custom_call.1} parent=1 // pred_region
      _
    $region21: #{tpu_custom_call.1} parent=1 // pred_fallthru
      _
    %v25 = vld [vmem:[%s0] sm:$0x3]
    %v26 = vld [vmem:[%s1] sm:$0xff]
    %v27 = vld [vmem:[%s1 + $0x8] sm:$0xff]
    %v28 = vld [vmem:[%s1 + $0x10] sm:$0xff]
    %v29 = vld [vmem:[%s1 + $0x18] sm:$0xff]
    %vm30 = vcmask 261120
    %v32 = vsel %vm30, %v25, 0
    %34 = vmatprep.subr.mxu0 0.0
    %35 = vmatpush1.msra.mxu0 %v26
    %36 = vmatprep.subr.mxu0 0.0
    %37 = vmatpush1.msra.mxu0 %v27
    %38 = vmatprep.subr.mxu0 0.0
    %39 = vmatpush1.msra.mxu0 %v28
    %40 = vmatprep.subr.mxu0 0.0
    %41 = vmatpush1.msra.mxu0 %v29
    %42 = vmatprep.subr.mxu0 0.0
    %43 = vmatpush1.msra.mxu0 0.0
    %44 = vmatprep.subr.mxu0 0.0
    %45 = vmatpush1.msra.mxu0 0.0
    %46 = vmatprep.subr.mxu0 0.0
    %47 = vmatpush1.msra.mxu0 0.0
    %48 = vmatprep.subr.mxu0 0.0
    %49 = vmatpush1.msra.mxu0 0.0
    %50 = vmatprep.subr.mxu0 0.0
    %51 = vmatpush1.msra.mxu0 0.0
    %52 = vmatprep.subr.mxu0 0.0
    %53 = vmatpush1.msra.mxu0 0.0
    %54 = vmatprep.subr.mxu0 0.0
    %55 = vmatpush1.msra.mxu0 0.0
    %56 = vmatprep.subr.mxu0 0.0
    %57 = vmatpush1.msra.mxu0 0.0
    %58 = vmatprep.subr.mxu0 0.0
    %59 = vmatpush1.msra.mxu0 0.0
    %60 = vmatprep.subr.mxu0 0.0
    %61 = vmatpush1.msra.mxu0 0.0
    %62 = vmatprep.subr.mxu0 0.0
    %63 = vmatpush1.msra.mxu0 0.0
    %64 = vmatprep.subr.mxu0 0.0
    %65 = vmatpush1.msra.mxu0 0.0
    %66 = vmatprep.subr.mxu0 0.0
    %67 = vmatpush1.msra.mxu0 0.0
    %68 = vmatprep.subr.mxu0 0.0
    %69 = vmatpush1.msra.mxu0 0.0
    %70 = vmatprep.subr.mxu0 0.0
    %71 = vmatpush1.msra.mxu0 0.0
    %72 = vmatprep.subr.mxu0 0.0
    %73 = vmatpush1.msra.mxu0 0.0
    %74 = vmatprep.subr.mxu0 0.0
    %75 = vmatpush1.msra.mxu0 0.0
    %76 = vmatprep.subr.mxu0 0.0
    %77 = vmatpush1.msra.mxu0 0.0
    %78 = vmatprep.subr.mxu0 0.0
    %79 = vmatpush1.msra.mxu0 0.0
    %80 = vmatprep.subr.mxu0 0.0
    %81 = vmatpush1.msra.mxu0 0.0
    %82 = vmatprep.subr.mxu0 0.0
    %83 = vmatpush1.msra.mxu0 0.0
    %84 = vmatprep.subr.mxu0 0.0
    %85 = vmatpush1.msra.mxu0 0.0
    %86 = vmatprep.subr.mxu0 0.0
    %87 = vmatpush1.msra.mxu0 0.0
    %88 = vmatprep.subr.mxu0 0.0
    %89 = vmatpush1.msra.mxu0 0.0
    %90 = vmatprep.subr.mxu0 0.0
    %91 = vmatpush1.msra.mxu0 0.0
    %92 = vmatprep.subr.mxu0 0.0
    %93 = vmatpush1.msra.mxu0 0.0
    %94 = vmatprep.subr.mxu0 0.0
    %95 = vmatpush1.msra.mxu0 0.0
    %96 = vmatprep.subr.mxu0 0.0
    %97 = vmatpush1.msra.mxu0 0.0
    %98 = vmatprep.mubr.f32.mxu0 0.0
    %99 = vmatmul.mubr.f32.gmra.mrb[0].mxu0 %v32
    %v100 = vpop.f32.mrb[0].mxu0
    %v101 = vadd.f32 0.0, %v100
    %v102 = vpop.f32.mrb[0].mxu0
    %103 = vdwg.mxu0
    %v104 = vmul.f32 %v25, %v25
    %v106 = vsel %vm30, %v104, 0
    %108 = vmatprep.subr.mxu0 0.0
    %109 = vmatpush1.msra.mxu0 %v26
    %110 = vmatprep.subr.mxu0 0.0
    %111 = vmatpush1.msra.mxu0 %v27
    %112 = vmatprep.subr.mxu0 0.0
    %113 = vmatpush1.msra.mxu0 %v28
    %114 = vmatprep.subr.mxu0 0.0
    %115 = vmatpush1.msra.mxu0 %v29
    %116 = vmatprep.subr.mxu0 0.0
    %117 = vmatpush1.msra.mxu0 0.0
    %118 = vmatprep.subr.mxu0 0.0
    %119 = vmatpush1.msra.mxu0 0.0
    %120 = vmatprep.subr.mxu0 0.0
    %121 = vmatpush1.msra.mxu0 0.0
    %122 = vmatprep.subr.mxu0 0.0
    %123 = vmatpush1.msra.mxu0 0.0
    %124 = vmatprep.subr.mxu0 0.0
    %125 = vmatpush1.msra.mxu0 0.0
    %126 = vmatprep.subr.mxu0 0.0
    %127 = vmatpush1.msra.mxu0 0.0
    %128 = vmatprep.subr.mxu0 0.0
    %129 = vmatpush1.msra.mxu0 0.0
    %130 = vmatprep.subr.mxu0 0.0
    %131 = vmatpush1.msra.mxu0 0.0
    %132 = vmatprep.subr.mxu0 0.0
    %133 = vmatpush1.msra.mxu0 0.0
    %134 = vmatprep.subr.mxu0 0.0
    %135 = vmatpush1.msra.mxu0 0.0
    %136 = vmatprep.subr.mxu0 0.0
    %137 = vmatpush1.msra.mxu0 0.0
    %138 = vmatprep.subr.mxu0 0.0
    %139 = vmatpush1.msra.mxu0 0.0
    %140 = vmatprep.subr.mxu0 0.0
    %141 = vmatpush1.msra.mxu0 0.0
    %142 = vmatprep.subr.mxu0 0.0
    %143 = vmatpush1.msra.mxu0 0.0
    %144 = vmatprep.subr.mxu0 0.0
    %145 = vmatpush1.msra.mxu0 0.0
    %146 = vmatprep.subr.mxu0 0.0
    %147 = vmatpush1.msra.mxu0 0.0
    %148 = vmatprep.subr.mxu0 0.0
    %149 = vmatpush1.msra.mxu0 0.0
    %150 = vmatprep.subr.mxu0 0.0
    %151 = vmatpush1.msra.mxu0 0.0
    %152 = vmatprep.subr.mxu0 0.0
    %153 = vmatpush1.msra.mxu0 0.0
    %154 = vmatprep.subr.mxu0 0.0
    %155 = vmatpush1.msra.mxu0 0.0
    %156 = vmatprep.subr.mxu0 0.0
    %157 = vmatpush1.msra.mxu0 0.0
    %158 = vmatprep.subr.mxu0 0.0
    %159 = vmatpush1.msra.mxu0 0.0
    %160 = vmatprep.subr.mxu0 0.0
    %161 = vmatpush1.msra.mxu0 0.0
    %162 = vmatprep.subr.mxu0 0.0
    %163 = vmatpush1.msra.mxu0 0.0
    %164 = vmatprep.subr.mxu0 0.0
    %165 = vmatpush1.msra.mxu0 0.0
    %166 = vmatprep.subr.mxu0 0.0
    %167 = vmatpush1.msra.mxu0 0.0
    %168 = vmatprep.subr.mxu0 0.0
    %169 = vmatpush1.msra.mxu0 0.0
    %170 = vmatprep.subr.mxu0 0.0
    %171 = vmatpush1.msra.mxu0 0.0
    %172 = vmatprep.mubr.f32.mxu0 0.0
    %173 = vmatmul.mubr.f32.gmra.mrb[0].mxu0 %v106
    %v174 = vpop.f32.mrb[0].mxu0
    %v175 = vadd.f32 0.0, %v174
    %v176 = vpop.f32.mrb[0].mxu0
    %177 = vdwg.mxu0
    %v178 = vmul.f32 %v101, 0.125
    %v179 = vmul.f32 %v175, 0.125
    %v180 = vmul.f32 %v178, %v178
    %v181 = vsub.f32 %v179, %v180
    %v182 = vmax.f32 %v181, 0.0
    %v183 = vadd.f32 %v182, 1e-05
    %v184 = vrsqrt.pop %v183
    %v185 = vmul.f32 %v183, %v184
    %v186 = vld [vmem:[%s3] sm:$0x1]
    %v188 = vlaneseq
    %v189 = vshrl.u32 %v188, 7
    %v190 = vsub.s32 0, %v189
    %v191 = vrot.slane %v186, %v190
    %v193 = vmul.f32 %v184, %v191
    %v194 = vld [vmem:[%s4] sm:$0x1]
    %v195 = vmul.f32 %v178, %v193
    %v197 = vlaneseq
    %v198 = vshrl.u32 %v197, 7
    %v199 = vsub.s32 0, %v198
    %v200 = vrot.slane %v194, %v199
    %v202 = vsub.f32 %v200, %v195
    %v203 = vld [vmem:[%s2] sm:$0xf]
    %vm204 = vcmask 31744
    %v206 = vsel %vm204, %v193, 0
    %vm208 = vcmask 1043456
    %v210 = vsel %vm208, %v203, 0
    %212 = vmatprep.subr.mxu0 0.0
    %213 = vmatpush1.msra.mxu0 %v210
    %214 = vmatprep.subr.mxu0 0.0
    %215 = vmatpush1.msra.mxu0 0.0
    %216 = vmatprep.subr.mxu0 0.0
    %217 = vmatpush1.msra.mxu0 0.0
    %218 = vmatprep.subr.mxu0 0.0
    %219 = vmatpush1.msra.mxu0 0.0
    %220 = vmatprep.subr.mxu0 0.0
    %221 = vmatpush1.msra.mxu0 0.0
    %222 = vmatprep.subr.mxu0 0.0
    %223 = vmatpush1.msra.mxu0 0.0
    %224 = vmatprep.subr.mxu0 0.0
    %225 = vmatpush1.msra.mxu0 0.0
    %226 = vmatprep.subr.mxu0 0.0
    %227 = vmatpush1.msra.mxu0 0.0
    %228 = vmatprep.subr.mxu0 0.0
    %229 = vmatpush1.msra.mxu0 0.0
    %230 = vmatprep.subr.mxu0 0.0
    %231 = vmatpush1.msra.mxu0 0.0
    %232 = vmatprep.subr.mxu0 0.0
    %233 = vmatpush1.msra.mxu0 0.0
    %234 = vmatprep.subr.mxu0 0.0
    %235 = vmatpush1.msra.mxu0 0.0
    %236 = vmatprep.subr.mxu0 0.0
    %237 = vmatpush1.msra.mxu0 0.0
    %238 = vmatprep.subr.mxu0 0.0
    %239 = vmatpush1.msra.mxu0 0.0
    %240 = vmatprep.subr.mxu0 0.0
    %241 = vmatpush1.msra.mxu0 0.0
    %242 = vmatprep.subr.mxu0 0.0
    %243 = vmatpush1.msra.mxu0 0.0
    %244 = vmatprep.subr.mxu0 0.0
    %245 = vmatpush1.msra.mxu0 0.0
    %246 = vmatprep.subr.mxu0 0.0
    %247 = vmatpush1.msra.mxu0 0.0
    %248 = vmatprep.subr.mxu0 0.0
    %249 = vmatpush1.msra.mxu0 0.0
    %250 = vmatprep.subr.mxu0 0.0
    %251 = vmatpush1.msra.mxu0 0.0
    %252 = vmatprep.subr.mxu0 0.0
    %253 = vmatpush1.msra.mxu0 0.0
    %254 = vmatprep.subr.mxu0 0.0
    %255 = vmatpush1.msra.mxu0 0.0
    %256 = vmatprep.subr.mxu0 0.0
    %257 = vmatpush1.msra.mxu0 0.0
    %258 = vmatprep.subr.mxu0 0.0
    %259 = vmatpush1.msra.mxu0 0.0
    %260 = vmatprep.subr.mxu0 0.0
    %261 = vmatpush1.msra.mxu0 0.0
    %262 = vmatprep.subr.mxu0 0.0
    %263 = vmatpush1.msra.mxu0 0.0
    %264 = vmatprep.subr.mxu0 0.0
    %265 = vmatpush1.msra.mxu0 0.0
    %266 = vmatprep.subr.mxu0 0.0
    %267 = vmatpush1.msra.mxu0 0.0
    %268 = vmatprep.subr.mxu0 0.0
    %269 = vmatpush1.msra.mxu0 0.0
    %270 = vmatprep.subr.mxu0 0.0
    %271 = vmatpush1.msra.mxu0 0.0
    %272 = vmatprep.subr.mxu0 0.0
    %273 = vmatpush1.msra.mxu0 0.0
    %274 = vmatprep.subr.mxu0 0.0
    %275 = vmatpush1.msra.mxu0 0.0
    %276 = vmatprep.mubr.f32.mxu0 0.0
    %277 = vmatmul.mubr.f32.gmra.mrb[0].mxu0 %v206
    %v278 = vpop.f32.mrb[0].mxu0
    %v279 = vadd.f32 0.0, %v278
    %v280 = vpop.f32.mrb[0].mxu0
    %281 = vdwg.mxu0
    %v283 = vsel %vm204, %v202, 0
    %285 = vmatprep.subr.mxu0 0.0
    %286 = vmatpush1.msra.mxu0 %v210
    %287 = vmatprep.subr.mxu0 0.0
    %288 = vmatpush1.msra.mxu0 0.0
    %289 = vmatprep.subr.mxu0 0.0
    %290 = vmatpush1.msra.mxu0 0.0
    %291 = vmatprep.subr.mxu0 0.0
    %292 = vmatpush1.msra.mxu0 0.0
    %293 = vmatprep.subr.mxu0 0.0
    %294 = vmatpush1.msra.mxu0 0.0
    %295 = vmatprep.subr.mxu0 0.0
    %296 = vmatpush1.msra.mxu0 0.0
    %297 = vmatprep.subr.mxu0 0.0
    %298 = vmatpush1.msra.mxu0 0.0
    %299 = vmatprep.subr.mxu0 0.0
    %300 = vmatpush1.msra.mxu0 0.0
    %301 = vmatprep.subr.mxu0 0.0
    %302 = vmatpush1.msra.mxu0 0.0
    %303 = vmatprep.subr.mxu0 0.0
    %304 = vmatpush1.msra.mxu0 0.0
    %305 = vmatprep.subr.mxu0 0.0
    %306 = vmatpush1.msra.mxu0 0.0
    %307 = vmatprep.subr.mxu0 0.0
    %308 = vmatpush1.msra.mxu0 0.0
    %309 = vmatprep.subr.mxu0 0.0
    %310 = vmatpush1.msra.mxu0 0.0
    %311 = vmatprep.subr.mxu0 0.0
    %312 = vmatpush1.msra.mxu0 0.0
    %313 = vmatprep.subr.mxu0 0.0
    %314 = vmatpush1.msra.mxu0 0.0
    %315 = vmatprep.subr.mxu0 0.0
    %316 = vmatpush1.msra.mxu0 0.0
    %317 = vmatprep.subr.mxu0 0.0
    %318 = vmatpush1.msra.mxu0 0.0
    %319 = vmatprep.subr.mxu0 0.0
    %320 = vmatpush1.msra.mxu0 0.0
    %321 = vmatprep.subr.mxu0 0.0
    %322 = vmatpush1.msra.mxu0 0.0
    %323 = vmatprep.subr.mxu0 0.0
    %324 = vmatpush1.msra.mxu0 0.0
    %325 = vmatprep.subr.mxu0 0.0
    %326 = vmatpush1.msra.mxu0 0.0
    %327 = vmatprep.subr.mxu0 0.0
    %328 = vmatpush1.msra.mxu0 0.0
    %329 = vmatprep.subr.mxu0 0.0
    %330 = vmatpush1.msra.mxu0 0.0
    %331 = vmatprep.subr.mxu0 0.0
    %332 = vmatpush1.msra.mxu0 0.0
    %333 = vmatprep.subr.mxu0 0.0
    %334 = vmatpush1.msra.mxu0 0.0
    %335 = vmatprep.subr.mxu0 0.0
    %336 = vmatpush1.msra.mxu0 0.0
    %337 = vmatprep.subr.mxu0 0.0
    %338 = vmatpush1.msra.mxu0 0.0
    %339 = vmatprep.subr.mxu0 0.0
    %340 = vmatpush1.msra.mxu0 0.0
    %341 = vmatprep.subr.mxu0 0.0
    %342 = vmatpush1.msra.mxu0 0.0
    %343 = vmatprep.subr.mxu0 0.0
    %344 = vmatpush1.msra.mxu0 0.0
    %345 = vmatprep.subr.mxu0 0.0
    %346 = vmatpush1.msra.mxu0 0.0
    %347 = vmatprep.subr.mxu0 0.0
    %348 = vmatpush1.msra.mxu0 0.0
    %349 = vmatprep.mubr.f32.mxu0 0.0
    %350 = vmatmul.mubr.f32.gmra.mrb[0].mxu0 %v283
    %v351 = vpop.f32.mrb[0].mxu0
    %v352 = vadd.f32 0.0, %v351
    %v353 = vpop.f32.mrb[0].mxu0
    %354 = vdwg.mxu0
    %v355 = vmul.f32 %v25, %v279
    %v356 = vadd.f32 %v355, %v352
    %vm357 = vcmask 254976
    %358 = vst.msk [vmem:[#allocation2] sm:$0x3] %vm357, %v356
    %vm359 = vcmask 25600
    %360 = vst.msk [vmem:[#allocation4] sm:$0x3] %vm359, %v178
    %361 = vst.msk [vmem:[#allocation6] sm:$0x3] %vm359, %v185
    // Predicated region
    $region22: #{tpu_custom_call.1} parent=1 // pred_check
      _
    $region23: #{tpu_custom_call.1} parent=1 // pred_check_branch
      %363 = sbr.rel (0) target = $region25
    $region24: #{tpu_custom_call.1} parent=1 // pred_region
      %s365 = ssub.s32 32, 32
      %366 = vsyncadd [#allocation3], %s365
      %s368 = sshll.u32 [#allocation2], 4
      %s369 = int_to_ptr.vmem [resolvable:$true] %s368
      %371 = dma.vmem_to_hbm [thread:$0]  %s369, 32, %s5, [#allocation3]
    $region25: #{tpu_custom_call.1} parent=1 // pred_fallthru
      _
    // Predicated region
    $region26: #{tpu_custom_call.1} parent=1 // pred_check
      _
    $region27: #{tpu_custom_call.1} parent=1 // pred_check_branch
      %373 = sbr.rel (0) target = $region29
    $region28: #{tpu_custom_call.1} parent=1 // pred_region
      %s375 = ssub.s32 32, 32
      %376 = vsyncadd [#allocation5], %s375
      %s378 = sshll.u32 [#allocation4], 4
      %s379 = int_to_ptr.vmem [resolvable:$true] %s378
      %381 = dma.vmem_to_hbm [thread:$0]  %s379, 32, %s6, [#allocation5]
    $region29: #{tpu_custom_call.1} parent=1 // pred_fallthru
      _
    // Predicated region
    $region30: #{tpu_custom_call.1} parent=1 // pred_check
      _
    $region31: #{tpu_custom_call.1} parent=1 // pred_check_branch
      %383 = sbr.rel (0) target = $region33
    $region32: #{tpu_custom_call.1} parent=1 // pred_region
      %s385 = ssub.s32 32, 32
      %386 = vsyncadd [#allocation5], %s385
      %s388 = sshll.u32 [#allocation6], 4
      %s389 = int_to_ptr.vmem [resolvable:$true] %s388
      %391 = dma.vmem_to_hbm [thread:$0]  %s389, 32, %s7, [#allocation5]
    $region33: #{tpu_custom_call.1} parent=1 // pred_fallthru
      _
    // Predicated region
    $region34: #{tpu_custom_call.1} parent=1 // pred_check
      _
    $region35: #{tpu_custom_call.1} parent=1 // pred_check_branch
      %393 = sbr.rel (0) target = $region37
    $region36: #{tpu_custom_call.1} parent=1 // pred_region
      %394 = dma.done [#allocation3], 32
    $region37: #{tpu_custom_call.1} parent=1 // pred_fallthru
      _
    // Predicated region
    $region38: #{tpu_custom_call.1} parent=1 // pred_check
      _
    $region39: #{tpu_custom_call.1} parent=1 // pred_check_branch
      %396 = sbr.rel (0) target = $region41
    $region40: #{tpu_custom_call.1} parent=1 // pred_region
      %397 = dma.done [#allocation5], 32
    $region41: #{tpu_custom_call.1} parent=1 // pred_fallthru
      _
    // Predicated region
    $region42: #{tpu_custom_call.1} parent=1 // pred_check
      _
    $region43: #{tpu_custom_call.1} parent=1 // pred_check_branch
      %399 = sbr.rel (0) target = $region45
    $region44: #{tpu_custom_call.1} parent=1 // pred_region
      %400 = dma.done [#allocation5], 32
    $region45: #{tpu_custom_call.1} parent=1 // pred_fallthru
      _
    %401 = vsyncpa [#allocation3], 1
    %402 = vsyncpa [#allocation5], 1

</llo_original>
